<compile_context>
chip_gen: v6e
topology: v6e:2x2x1
jax: 0.10.0
libtpu: 0.0.40
codegen_flags: <defaults>
</compile_context>

<pallas_src>
import functools

import jax
import jax.numpy as jnp
from jax.experimental import pallas as pl
from jax.experimental.pallas import tpu as pltpu


def _round_up(x: int, m: int) -> int:
    return ((x + m - 1) // m) * m


def _multi_embedding_kernel(x_ref, cols_ref, out_ref, *, embedding_indices):
    """x_ref: (TB, F) input tile. cols_ref: (K, N_pad) packed table_k[:, 0]."""
    x = x_ref[...]                                    # (TB, F) original values
    out_ref[...] = x                                  # passthrough copy (1 pass)

    tb = x.shape[0]
    n_pad = cols_ref.shape[1]
    n_iota = jax.lax.broadcasted_iota(jnp.int32, (tb, n_pad), 1)

    for k, idx in enumerate(embedding_indices):       # K is small and static
        # `.long()` on a float truncates toward zero; astype(int32) matches.
        ids = x[:, idx:idx + 1].astype(jnp.int32)     # (TB, 1)
        row = cols_ref[k:k + 1, :]                    # (1, N_pad) = table_k[:, 0]
        # Compare-select-reduce gather (VPU + XLU); exact for f32 entries.
        # TODO(synk): out-of-range/negative codes silently yield 0.0 here,
        # whereas torch nn.Embedding would raise an index error.
        hit = jnp.where(n_iota == ids, row, 0.0)      # (TB, N_pad)
        emb0 = jnp.sum(hit, axis=1, keepdims=True)    # (TB, 1)
        # Narrow static column store (masked vst) instead of a full where-pass.
        out_ref[:, idx:idx + 1] = emb0.astype(out_ref.dtype)


def multi_embedding(inputs, tables, embedding_indices, *, block_rows=512):
    """inputs: (B, F) float; tables: list of (N_k, D_k) float arrays."""
    B, F = inputs.shape
    K = len(embedding_indices)
    assert K == len(tables)

    # Pack only column 0 of every table into one lane-padded array.
    max_n = max(int(t.shape[0]) for t in tables)
    n_pad = max(128, _round_up(max_n, 128))
    cols = jnp.zeros((K, n_pad), jnp.float32)
    for k, t in enumerate(tables):
        cols = cols.at[k, : t.shape[0]].set(t[:, 0].astype(jnp.float32))

    # Tile the batch; pad B so the row-tile divides it evenly.
    tb = min(block_rows, _round_up(B, 8))
    b_pad = _round_up(B, tb)
    x = inputs if b_pad == B else jnp.pad(inputs, ((0, b_pad - B), (0, 0)))

    kernel = functools.partial(
        _multi_embedding_kernel,
        embedding_indices=tuple(int(i) for i in embedding_indices))

    out = pl.pallas_call(
        kernel,
        grid=(b_pad // tb,),
        in_specs=[
            pl.BlockSpec((tb, F), lambda i: (i, 0)),       # input row tile
            pl.BlockSpec((K, n_pad), lambda i: (0, 0)),    # packed table col-0
        ],
        out_specs=pl.BlockSpec((tb, F), lambda i: (i, 0)),
        out_shape=jax.ShapeDtypeStruct((b_pad, F), inputs.dtype),
        compiler_params=pltpu.CompilerParams(
            dimension_semantics=("parallel",)),            # shards TCs on v7x
    )(x, cols)

    return out if b_pad == B else out[:B]


if __name__ == "__main__":
    # Module config (synthetic, deterministic).
    embedding_indices = [1, 5, 10]
    num_embeddings = [7, 11, 5]
    embedding_dims = [3, 4, 2]

    B, F = 8, 16
    key = jax.random.PRNGKey(0)
    k_in, *k_tabs = jax.random.split(key, 1 + len(num_embeddings))

    # Continuous features everywhere, integer categorical codes (stored as
    # floats, as the torch module expects) in the embedding columns.
    inputs = jax.random.normal(k_in, (B, F), dtype=jnp.float32)
    for idx, n in zip(embedding_indices, num_embeddings):
        codes = jax.random.randint(jax.random.fold_in(key, idx), (B,), 0, n)
        inputs = inputs.at[:, idx].set(codes.astype(jnp.float32))

    # nn.Embedding default init is N(0, 1): deterministic normal tables.
    tables = [jax.random.normal(k, (n, d), dtype=jnp.float32)
              for k, n, d in zip(k_tabs, num_embeddings, embedding_dims)]

    out = multi_embedding(inputs, tables, embedding_indices)
    out = jax.block_until_ready(out)

    # Pure-JAX reference of the torch forward.
    ref = inputs
    for idx, t in zip(embedding_indices, tables):
        ids = inputs[:, idx].astype(jnp.int32)
        ref = ref.at[:, idx].set(t[ids, 0])

    assert out.shape == inputs.shape and out.dtype == inputs.dtype
    assert jnp.allclose(out, ref, atol=1e-5, rtol=1e-5)
    print("KERNEL_OK")
</pallas_src>

<mosaic_0001>
module attributes {stable_mosaic.version = 11 : i64} {
  func.func @_multi_embedding_kernel(%arg0: i32, %arg1: memref<8x16xf32, #tpu.memory_space<vmem>>, %arg2: memref<3x128xf32, #tpu.memory_space<vmem>>, %arg3: memref<8x16xf32, #tpu.memory_space<vmem>>) attributes {dimension_semantics = [#tpu.dimension_semantics<parallel>], iteration_bounds = array<i64: 1>, scalar_prefetch = 0 : i64, scratch_operands = 0 : i64, tpu.core_type = #tpu.core_type<tc>, window_params = [{transform_indices = @transform_0, window_bounds = array<i64: 8, 16>}, {pipeline_mode = #tpu.pipeline_mode<synchronous>, transform_indices = @transform_1, window_bounds = array<i64: 3, 128>}, {transform_indices = @transform_2, window_bounds = array<i64: 8, 16>}]} {
    %c0 = arith.constant 0 : index
    %c0_0 = arith.constant 0 : index
    %0 = vector.load %arg1[%c0, %c0_0] : memref<8x16xf32, #tpu.memory_space<vmem>>, vector<8x16xf32>
    %c0_1 = arith.constant 0 : index
    %c0_2 = arith.constant 0 : index
    %1 = vector.load %arg3[%c0_1, %c0_2] : memref<8x16xf32, #tpu.memory_space<vmem>>, vector<8x16xf32>
    tpu.vector_store %arg3[%c0_1, %c0_2], %0 {strides = array<i32>} : memref<8x16xf32, #tpu.memory_space<vmem>>, vector<8x16xf32>,
    %2 = tpu.iota {dimensions = array<i32: 1>} : vector<8x128xi32>
    %3 = vector.extract_strided_slice %0 {offsets = [0, 1], sizes = [8, 1], strides = [1, 1]} : vector<8x16xf32> to vector<8x1xf32>
    %4 = arith.fptosi %3 : vector<8x1xf32> to vector<8x1xi32>
    %c0_3 = arith.constant 0 : index
    %c0_4 = arith.constant 0 : index
    %5 = vector.load %arg2[%c0_3, %c0_4] : memref<3x128xf32, #tpu.memory_space<vmem>>, vector<1x128xf32>
    %6 = vector.broadcast %4 : vector<8x1xi32> to vector<8x128xi32>
    %7 = arith.cmpi eq, %2, %6 : vector<8x128xi32>
    %cst = arith.constant 0.000000e+00 : f32
    %8 = vector.shape_cast %5 : vector<1x128xf32> to vector<1x128xf32>
    %9 = vector.broadcast %8 : vector<1x128xf32> to vector<8x128xf32>
    %10 = vector.broadcast %cst : f32 to vector<8x128xf32>
    %11 = arith.select %7, %9, %10 : vector<8x128xi1>, vector<8x128xf32>
    %cst_5 = arith.constant dense<0.000000e+00> : vector<8xf32>
    %12 = vector.multi_reduction <add>, %11, %cst_5 [1] : vector<8x128xf32> to vector<8xf32>
    %13 = vector.shape_cast %12 : vector<8xf32> to vector<8x1xf32>
    %c0_6 = arith.constant 0 : index
    %c1 = arith.constant 1 : index
    %14 = vector.load %arg3[%c0_6, %c1] : memref<8x16xf32, #tpu.memory_space<vmem>>, vector<8x1xf32>
    tpu.vector_store %arg3[%c0_6, %c1], %13 {strides = array<i32>} : memref<8x16xf32, #tpu.memory_space<vmem>>, vector<8x1xf32>,
    %15 = vector.extract_strided_slice %0 {offsets = [0, 5], sizes = [8, 1], strides = [1, 1]} : vector<8x16xf32> to vector<8x1xf32>
    %16 = arith.fptosi %15 : vector<8x1xf32> to vector<8x1xi32>
    %c1_7 = arith.constant 1 : index
    %c0_8 = arith.constant 0 : index
    %17 = vector.load %arg2[%c1_7, %c0_8] : memref<3x128xf32, #tpu.memory_space<vmem>>, vector<1x128xf32>
    %18 = vector.broadcast %16 : vector<8x1xi32> to vector<8x128xi32>
    %19 = arith.cmpi eq, %2, %18 : vector<8x128xi32>
    %cst_9 = arith.constant 0.000000e+00 : f32
    %20 = vector.shape_cast %17 : vector<1x128xf32> to vector<1x128xf32>
    %21 = vector.broadcast %20 : vector<1x128xf32> to vector<8x128xf32>
    %22 = vector.broadcast %cst_9 : f32 to vector<8x128xf32>
    %23 = arith.select %19, %21, %22 : vector<8x128xi1>, vector<8x128xf32>
    %cst_10 = arith.constant dense<0.000000e+00> : vector<8xf32>
    %24 = vector.multi_reduction <add>, %23, %cst_10 [1] : vector<8x128xf32> to vector<8xf32>
    %25 = vector.shape_cast %24 : vector<8xf32> to vector<8x1xf32>
    %c0_11 = arith.constant 0 : index
    %c5 = arith.constant 5 : index
    %26 = vector.load %arg3[%c0_11, %c5] : memref<8x16xf32, #tpu.memory_space<vmem>>, vector<8x1xf32>
    tpu.vector_store %arg3[%c0_11, %c5], %25 {strides = array<i32>} : memref<8x16xf32, #tpu.memory_space<vmem>>, vector<8x1xf32>,
    %27 = vector.extract_strided_slice %0 {offsets = [0, 10], sizes = [8, 1], strides = [1, 1]} : vector<8x16xf32> to vector<8x1xf32>
    %28 = arith.fptosi %27 : vector<8x1xf32> to vector<8x1xi32>
    %c2 = arith.constant 2 : index
    %c0_12 = arith.constant 0 : index
    %29 = vector.load %arg2[%c2, %c0_12] : memref<3x128xf32, #tpu.memory_space<vmem>>, vector<1x128xf32>
    %30 = vector.broadcast %28 : vector<8x1xi32> to vector<8x128xi32>
    %31 = arith.cmpi eq, %2, %30 : vector<8x128xi32>
    %cst_13 = arith.constant 0.000000e+00 : f32
    %32 = vector.shape_cast %29 : vector<1x128xf32> to vector<1x128xf32>
    %33 = vector.broadcast %32 : vector<1x128xf32> to vector<8x128xf32>
    %34 = vector.broadcast %cst_13 : f32 to vector<8x128xf32>
    %35 = arith.select %31, %33, %34 : vector<8x128xi1>, vector<8x128xf32>
    %cst_14 = arith.constant dense<0.000000e+00> : vector<8xf32>
    %36 = vector.multi_reduction <add>, %35, %cst_14 [1] : vector<8x128xf32> to vector<8xf32>
    %37 = vector.shape_cast %36 : vector<8xf32> to vector<8x1xf32>
    %c0_15 = arith.constant 0 : index
    %c10 = arith.constant 10 : index
    %38 = vector.load %arg3[%c0_15, %c10] : memref<8x16xf32, #tpu.memory_space<vmem>>, vector<8x1xf32>
    tpu.vector_store %arg3[%c0_15, %c10], %37 {strides = array<i32>} : memref<8x16xf32, #tpu.memory_space<vmem>>, vector<8x1xf32>,
    return
  }
  func.func @transform_0(%arg0: i32) -> (i32, i32) {
    %c0_i32 = arith.constant 0 : i32
    %c0_i32_0 = arith.constant 0 : i32
    return %arg0, %c0_i32 : i32, i32
  }
  func.func @transform_1(%arg0: i32) -> (i32, i32) {
    %c0_i32 = arith.constant 0 : i32
    %c0_i32_0 = arith.constant 0 : i32
    %c0_i32_1 = arith.constant 0 : i32
    return %c0_i32, %c0_i32_0 : i32, i32
  }
  func.func @transform_2(%arg0: i32) -> (i32, i32) {
    %c0_i32 = arith.constant 0 : i32
    %c0_i32_0 = arith.constant 0 : i32
    return %arg0, %c0_i32 : i32, i32
  }
}

</mosaic_0001>

<llo_original>
// kernel: tpu_custom_call.1
$region0: #{tpu_custom_call.1}
  #allocation0 [shape = 'u32[]', space=smem, size = 0x4, offset = 0x4, fixed_abs, tag = 'smem constant byte address 0x4 - core index']
  #allocation1 [shape = 'u32[144,128]{1,0:T(1,128)}', space=vmem, size = 0x12000, scoped, tag = 'internal scratch']
  %s0 = inlined_call_operand.hbm [shape: f32[8,16], index: 0, kind: input, shape index: {}]
  %s1 = inlined_call_operand.hbm [shape: f32[3,128], index: 1, kind: input, shape index: {}]
  %s2 = inlined_call_operand.hbm [shape: f32[8,16], index: 2, kind: output, shape index: {}]
  %s3 = sld [smem:[#allocation0]]
  $region26: #{tpu_custom_call.1} parent=0
    _
  %s5 = ssub.s32 1, %s3
  %s6 = scalar_select 0, %s5, %s3
  $region1: #{tpu_custom_call.1} parent=0
    #allocation2 [shape = 'u8[4096]{0}', space=vmem, size = 0x1000, scoped, tag = 'input window, operand 0, single buffered']
    #allocation3 [shape = 's32[1]{0}', space=sflag, size = 0x4, scoped, tag = 'scoped memory for tpu_custom_call.1']
    #allocation4 [shape = 's32[1]{0}', space=sflag, size = 0x4, scoped, tag = 'scoped memory for tpu_custom_call.1']
    #allocation5 [shape = 'u8[2048]{0}', space=vmem, size = 0x800, scoped, tag = 'input window, operand 1, single buffered']
    #allocation6 [shape = 's32[1]{0}', space=sflag, size = 0x4, scoped, tag = 'scoped memory for tpu_custom_call.1']
    #allocation7 [shape = 'u8[4096]{0}', space=vmem, size = 0x1000, scoped, tag = 'output window, operand 0, single buffered']
    %7 = vsyncpa [#allocation3], 0
    %8 = vsyncpa [#allocation6], 0
    %9 = vsyncpa [#allocation4], 0
    // Predicated region
    $region2: #{tpu_custom_call.1} parent=1 // pred_check
      _
    $region3: #{tpu_custom_call.1} parent=1 // pred_check_branch
      %11 = sbr.rel (0) target = $region5
    $region4: #{tpu_custom_call.1} parent=1 // pred_region
      %s13 = ssub.s32 128, 128
      %14 = vsyncadd [#allocation3], %s13
      %s16 = sshll.u32 [#allocation2], 4
      %s17 = int_to_ptr.vmem [resolvable:$true] %s16
      %19 = dma.hbm_to_vmem [thread:$0]  %s0, 128, %s17, [#allocation3]
    $region5: #{tpu_custom_call.1} parent=1 // pred_fallthru
      _
    // Predicated region
    $region6: #{tpu_custom_call.1} parent=1 // pred_check
      _
    $region7: #{tpu_custom_call.1} parent=1 // pred_check_branch
      %21 = sbr.rel (0) target = $region9
    $region8: #{tpu_custom_call.1} parent=1 // pred_region
      %s23 = ssub.s32 64, 64
      %24 = vsyncadd [#allocation6], %s23
      %s26 = sshll.u32 [#allocation5], 4
      %s27 = int_to_ptr.vmem [resolvable:$true] %s26
      %29 = dma.hbm_to_vmem [thread:$0]  %s1, 64, %s27, [#allocation6]
    $region9: #{tpu_custom_call.1} parent=1 // pred_fallthru
      _
    // Predicated region
    $region10: #{tpu_custom_call.1} parent=1 // pred_check
      _
    $region11: #{tpu_custom_call.1} parent=1 // pred_check_branch
      %31 = sbr.rel (0) target = $region13
    $region12: #{tpu_custom_call.1} parent=1 // pred_region
      %32 = dma.done [#allocation3], 128
    $region13: #{tpu_custom_call.1} parent=1 // pred_fallthru
      _
    // Predicated region
    $region14: #{tpu_custom_call.1} parent=1 // pred_check
      _
    $region15: #{tpu_custom_call.1} parent=1 // pred_check_branch
      %34 = sbr.rel (0) target = $region17
    $region16: #{tpu_custom_call.1} parent=1 // pred_region
      %35 = dma.done [#allocation6], 64
    $region17: #{tpu_custom_call.1} parent=1 // pred_fallthru
      _
    %v36 = vld [vmem:[#allocation2] sm:$0xff]
    %vm37 = vcmask 130048
    %38 = vst.msk [vmem:[#allocation7] sm:$0xff] %vm37, %v36
    %v39 = vlaneseq
    %v40 = vand.u32 %v39, 127
    %v41 = vcvt.f32.s32.to.zero.pseudo %v36
    %v42 = vld [vmem:[#allocation5] sm:$0x1]
    %43 = vset.pattern.permute.xlu0 1
    %44 = vperm.xlu0 %43, %v41
    %v45 = vpop.permute.xlu0 %44
    %vm46 = vcmp.eq.s32.totalorder %v40, %v45
    %v47 = vlaneseq
    %v48 = vshrl.u32 %v47, 7
    %v49 = vsub.s32 0, %v48
    %v50 = vrot.slane %v42, %v49
    %v51 = vsel %vm46, %v50, 0.0
    %52 = vadd.xlane.f32.xlu0 %v51
    %v53 = vpop.xlane.xlu0 %52
    %vm54 = vcmask 15368
    %55 = vst.msk [vmem:[#allocation7] sm:$0xff] %vm54, %v53
    %v56 = vld [vmem:[#allocation5 + $0x1] sm:$0x1]
    %57 = vset.pattern.permute.xlu0 5
    %58 = vperm.xlu0 %57, %v41
    %v59 = vpop.permute.xlu0 %58
    %vm60 = vcmp.eq.s32.totalorder %v40, %v59
    %v61 = vlaneseq
    %v62 = vshrl.u32 %v61, 7
    %v63 = vsub.s32 0, %v62
    %v64 = vrot.slane %v56, %v63
    %v65 = vsel %vm60, %v64, 0.0
    %66 = vadd.xlane.f32.xlu0 %v65
    %v67 = vpop.xlane.xlu0 %66
    %vm68 = vcmask 48168
    %69 = vst.msk [vmem:[#allocation7] sm:$0xff] %vm68, %v67
    %v70 = vld [vmem:[#allocation5 + $0x2] sm:$0x1]
    %71 = vset.pattern.permute.xlu0 10
    %72 = vperm.xlu0 %71, %v41
    %v73 = vpop.permute.xlu0 %72
    %vm74 = vcmp.eq.s32.totalorder %v40, %v73
    %v75 = vlaneseq
    %v76 = vshrl.u32 %v75, 7
    %v77 = vsub.s32 0, %v76
    %v78 = vrot.slane %v70, %v77
    %v79 = vsel %vm74, %v78, 0.0
    %80 = vadd.xlane.f32.xlu0 %v79
    %v81 = vpop.xlane.xlu0 %80
    %vm82 = vcmask 89168
    %83 = vst.msk [vmem:[#allocation7] sm:$0xff] %vm82, %v81
    // Predicated region
    $region18: #{tpu_custom_call.1} parent=1 // pred_check
      _
    $region19: #{tpu_custom_call.1} parent=1 // pred_check_branch
      %85 = sbr.rel (0) target = $region21
    $region20: #{tpu_custom_call.1} parent=1 // pred_region
      %s87 = ssub.s32 128, 128
      %88 = vsyncadd [#allocation4], %s87
      %s90 = sshll.u32 [#allocation7], 4
      %s91 = int_to_ptr.vmem [resolvable:$true] %s90
      %93 = dma.vmem_to_hbm [thread:$0]  %s91, 128, %s2, [#allocation4]
    $region21: #{tpu_custom_call.1} parent=1 // pred_fallthru
      _
    // Predicated region
    $region22: #{tpu_custom_call.1} parent=1 // pred_check
      _
    $region23: #{tpu_custom_call.1} parent=1 // pred_check_branch
      %95 = sbr.rel (0) target = $region25
    $region24: #{tpu_custom_call.1} parent=1 // pred_region
      %96 = dma.done [#allocation4], 128
    $region25: #{tpu_custom_call.1} parent=1 // pred_fallthru
      _
    %97 = vsyncpa [#allocation3], 1
    %98 = vsyncpa [#allocation6], 1
    %99 = vsyncpa [#allocation4], 1

</llo_original>
